<compile_context>
chip_gen: v7x
topology: tpu7x:2x2x1
jax: 0.10.0
libtpu: 0.0.40
codegen_flags: <defaults>
</compile_context>

<pallas_src>
import math

import jax
import jax.numpy as jnp
import numpy as np
from jax.experimental import pallas as pl
from jax.experimental.pallas import tpu as pltpu


# ---------------------------------------------------------------------------
# helpers
# ---------------------------------------------------------------------------

def _rup(x, m):
    return ((x + m - 1) // m) * m


def _pad2d(x, rows, cols):
    r, c = x.shape
    if r == rows and c == cols:
        return x
    return jnp.pad(x, ((0, rows - r), (0, cols - c)))


def _pick_tile(dim, max_t, mult):
    """Largest multiple of `mult` <= max_t that divides `dim`; else pad-tile."""
    best = None
    t = mult
    while t <= max_t:
        if dim % t == 0:
            best = t
        t += mult
    if best is not None:
        return best
    return min(max_t, _rup(dim, mult))


def _default_vmem_limit():
    # ~3/4 of physical VMEM: ~96 MiB on v5e/v6e (128 MiB), ~48 MiB on v7x (64 MiB).
    try:
        cap = int(pltpu.get_tpu_info().vmem_capacity_bytes)
        return max(32 * 1024 * 1024, (cap * 3) // 4)
    except Exception:
        return 48 * 1024 * 1024


_VMEM_LIMIT = _default_vmem_limit()


# ---------------------------------------------------------------------------
# Kernel 1: head-major fused projection
#   out[b, g] = x[b] @ W[g] + bias[g]      (W already LoRA-merged, scaled, bf16)
#   Output layout (B, G, L, Dp) is exactly what flash attention consumes,
#   so no XLA head-split transposes are needed.
# ---------------------------------------------------------------------------

def _headed_proj_kernel(x_ref, w_ref, b_ref, o_ref):
    y = jnp.dot(x_ref[0], w_ref[0],
                preferred_element_type=jnp.float32) + b_ref[0]
    o_ref[0, 0] = y.astype(o_ref.dtype)


def headed_projection(x_b, w_heads, b_heads, *, row_tile):
    """x_b:(B, L_p, E) bf16, w_heads:(G, E, D_p) bf16, b_heads:(G, 1, D_p) f32
       -> (B, G, L_p, D_p) bf16."""
    B, L_p, E = x_b.shape
    G, _, D_p = w_heads.shape
    n_row = L_p // row_tile

    x_bytes = B * L_p * E * 2
    w_bytes = G * E * D_p * 2
    # Grid order picks which operand stays resident across the inner loop:
    # weights-stationary (small-token, weight-bound regime) re-reads x G times;
    # x-stationary (large-token regime) re-reads the weights n_row*B times.
    weights_stationary = G * x_bytes <= n_row * B * w_bytes
    if weights_stationary:
        grid = (G, n_row, B)
        x_map = lambda g, i, b: (b, i, 0)
        w_map = lambda g, i, b: (g, 0, 0)
        o_map = lambda g, i, b: (b, g, i, 0)
        x_rr, w_rr = G, 1
    else:
        grid = (n_row, B, G)
        x_map = lambda i, b, g: (b, i, 0)
        w_map = lambda i, b, g: (g, 0, 0)
        o_map = lambda i, b, g: (b, g, i, 0)
        x_rr, w_rr = 1, n_row * B

    flops = 2 * B * L_p * E * D_p * G
    bytes_accessed = (x_rr * x_bytes + w_rr * w_bytes
                      + B * G * L_p * D_p * 2 + G * D_p * 4)

    return pl.pallas_call(
        _headed_proj_kernel,
        out_shape=jax.ShapeDtypeStruct((B, G, L_p, D_p), jnp.bfloat16),
        grid_spec=pltpu.PrefetchScalarGridSpec(
            num_scalar_prefetch=0,
            grid=grid,
            in_specs=[
                pl.BlockSpec((1, row_tile, E), x_map),    # activations
                pl.BlockSpec((1, E, D_p), w_map),         # merged weights (per head)
                pl.BlockSpec((1, 1, D_p), w_map),         # bias (per head)
            ],
            out_specs=pl.BlockSpec((1, 1, row_tile, D_p), o_map),
        ),
        compiler_params=pltpu.CompilerParams(
            dimension_semantics=("parallel", "parallel", "parallel"),
            vmem_limit_bytes=_VMEM_LIMIT,
        ),
        cost_estimate=pl.CostEstimate(flops=int(flops), transcendentals=0,
                                      bytes_accessed=int(bytes_accessed)),
    )(x_b, w_heads, b_heads)


# ---------------------------------------------------------------------------
# Kernel 2: plain tiled linear  y = x @ W + bias   (weights pre-padded in prep)
#   Used for the output projection (LoRA already merged into W).
# ---------------------------------------------------------------------------

def _linear_kernel(x_ref, w_ref, b_ref, o_ref, acc_ref):
    k = pl.program_id(2)

    @pl.when(k == 0)
    def _():
        acc_ref[...] = jnp.zeros_like(acc_ref)

    acc_ref[...] += jnp.dot(x_ref[...], w_ref[...],
                            preferred_element_type=jnp.float32)

    @pl.when(k == pl.num_programs(2) - 1)
    def _():
        o_ref[...] = (acc_ref[...] + b_ref[...]).astype(o_ref.dtype)


def prep_plain_linear(w_t, bias, *, tn_max=768, tk_max=1024):
    """One-time prep: pick tiles that divide the true dims, pad, cast bf16."""
    K, M = w_t.shape
    tk = _pick_tile(K, tk_max, 128)
    tn = _pick_tile(M, tn_max, 128)
    k_p, m_p = _rup(K, tk), _rup(M, tn)
    return dict(
        w=_pad2d(w_t.astype(jnp.bfloat16), k_p, m_p),
        b=_pad2d(bias.reshape(1, -1).astype(jnp.float32), 1, m_p),
        K=K, M=M, tk=tk, tn=tn, k_p=k_p, m_p=m_p)


def plain_linear(x, pp, *, out_dtype=jnp.float32, tm_max=256):
    n = x.shape[0]
    tm = min(tm_max, _rup(n, 8))
    n_p = _rup(n, tm)
    k_p, m_p, tk, tn = pp['k_p'], pp['m_p'], pp['tk'], pp['tn']
    x_p = _pad2d(x.astype(jnp.bfloat16), n_p, k_p)

    grid = (n_p // tm, m_p // tn, k_p // tk)
    flops = 2 * n_p * k_p * m_p
    bytes_accessed = (grid[1] * n_p * k_p * 2 + grid[0] * k_p * m_p * 2
                      + 4 * m_p + n_p * m_p * jnp.dtype(out_dtype).itemsize)

    out = pl.pallas_call(
        _linear_kernel,
        out_shape=jax.ShapeDtypeStruct((n_p, m_p), out_dtype),
        grid_spec=pltpu.PrefetchScalarGridSpec(
            num_scalar_prefetch=0,
            grid=grid,
            in_specs=[
                pl.BlockSpec((tm, tk), lambda i, j, k: (i, k)),
                # TODO(synk): on v5e add pipeline_mode=pl.Buffered(3) here
                #             (weight-DMA bound at small token counts).
                pl.BlockSpec((tk, tn), lambda i, j, k: (k, j)),
                pl.BlockSpec((1, tn), lambda i, j, k: (0, j)),
            ],
            out_specs=pl.BlockSpec((tm, tn), lambda i, j, k: (i, j)),
            scratch_shapes=[pltpu.VMEM((tm, tn), jnp.float32)],
        ),
        compiler_params=pltpu.CompilerParams(
            dimension_semantics=("parallel", "parallel", "arbitrary"),
            vmem_limit_bytes=_VMEM_LIMIT,
        ),
        cost_estimate=pl.CostEstimate(flops=int(flops), transcendentals=0,
                                      bytes_accessed=int(bytes_accessed)),
    )(x_p, pp['w'], pp['b'])
    return out[:n, :pp['M']]


# ---------------------------------------------------------------------------
# Kernel 3: flash-style scaled-dot-product attention
#   q is pre-scaled (1/sqrt(head_dim) folded into the q projection weights);
#   consumes the head-major (B, G, L, Dp) projection output directly.
# ---------------------------------------------------------------------------

def _make_flash_kernel(needs_mask, last_valid_cols):
    def kernel(q_ref, k_ref, v_ref, o_ref, m_ref, l_ref, acc_ref):
        kv = pl.program_id(3)

        @pl.when(kv == 0)
        def _():
            m_ref[...] = jnp.full_like(m_ref, -jnp.inf)
            l_ref[...] = jnp.zeros_like(l_ref)
            acc_ref[...] = jnp.zeros_like(acc_ref)

        q = q_ref[0, 0]                                               # (tq, Dp) bf16
        k = k_ref[0, 0]                                               # (tk, Dp) bf16
        s = jax.lax.dot_general(q, k, (((1,), (1,)), ((), ())),
                                preferred_element_type=jnp.float32)   # (tq, tk)

        def update(scores):
            m_prev = m_ref[...]
            m_new = jnp.maximum(m_prev, jnp.max(scores, axis=-1, keepdims=True))
            alpha = jnp.exp(m_prev - m_new)
            p = jnp.exp(scores - m_new)
            l_ref[...] = alpha * l_ref[...] + jnp.sum(p, axis=-1, keepdims=True)
            acc_ref[...] = alpha * acc_ref[...] + jnp.dot(
                p.astype(v_ref.dtype), v_ref[0, 0],
                preferred_element_type=jnp.float32)
            m_ref[...] = m_new

        if needs_mask:  # static: only emitted when the key axis was padded
            last = pl.num_programs(3) - 1

            @pl.when(kv != last)        # interior tiles: no VPU mask work
            def _():
                update(s)

            @pl.when(kv == last)        # last tile: mask the padded columns
            def _():
                col = jax.lax.broadcasted_iota(jnp.int32, s.shape, 1)
                update(jnp.where(col < last_valid_cols, s, -1e30))
        else:
            update(s)

        @pl.when(kv == pl.num_programs(3) - 1)
        def _():
            o_ref[0, 0] = (acc_ref[...] *
                           pl.reciprocal(l_ref[...], approx=True)).astype(o_ref.dtype)

    return kernel


def flash_sdpa(q_arr, k_arr, v_arr, *, num_heads, q_off, k_off, v_off,
               src_len, tq, tk_kv):
    """q_arr:(B,Gq,T_p,D_p) k/v_arr:(B,Gk,S_p,D_p) bf16 -> (B,H,T_p,D_p) bf16."""
    B, _, T_p, D_p = q_arr.shape
    S_p = k_arr.shape[2]
    n_q, n_kv = T_p // tq, S_p // tk_kv
    needs_mask = (S_p != src_len)
    last_valid = src_len - (n_kv - 1) * tk_kv
    grid = (B, num_heads, n_q, n_kv)

    flops = 4 * B * num_heads * T_p * S_p * D_p
    bytes_accessed = (2 * B * num_heads * T_p * D_p * 2            # q read + out write
                      + 2 * n_q * B * num_heads * S_p * D_p * 2)   # k,v re-read per q tile

    return pl.pallas_call(
        _make_flash_kernel(needs_mask, last_valid),
        out_shape=jax.ShapeDtypeStruct((B, num_heads, T_p, D_p), jnp.bfloat16),
        grid_spec=pltpu.PrefetchScalarGridSpec(
            num_scalar_prefetch=0,
            grid=grid,
            in_specs=[
                pl.BlockSpec((1, 1, tq, D_p),
                             lambda b, h, i, j: (b, h + q_off, i, 0)),
                pl.BlockSpec((1, 1, tk_kv, D_p),
                             lambda b, h, i, j: (b, h + k_off, j, 0)),
                pl.BlockSpec((1, 1, tk_kv, D_p),
                             lambda b, h, i, j: (b, h + v_off, j, 0)),
            ],
            out_specs=pl.BlockSpec((1, 1, tq, D_p),
                                   lambda b, h, i, j: (b, h, i, 0)),
            scratch_shapes=[pltpu.VMEM((tq, 1), jnp.float32),    # running max
                            pltpu.VMEM((tq, 1), jnp.float32),    # running sum
                            pltpu.VMEM((tq, D_p), jnp.float32)], # accumulator
        ),
        compiler_params=pltpu.CompilerParams(
            dimension_semantics=("parallel", "parallel", "parallel", "arbitrary"),
            vmem_limit_bytes=_VMEM_LIMIT,
        ),
        cost_estimate=pl.CostEstimate(
            flops=int(flops),
            transcendentals=int(B * num_heads * T_p * S_p),
            bytes_accessed=int(bytes_accessed)),
    )(q_arr, k_arr, v_arr)


# ---------------------------------------------------------------------------
# One-time parameter prep (host-side): merge LoRA, fold scales, head-split,
# pad head_dim to a 128 multiple, cast to bf16, pre-pad o-proj tiles.
# ---------------------------------------------------------------------------

def prepare_params(params, num_heads, scaling):
    E = params['q'][0].shape[0]
    H = num_heads
    D = E // H
    D_p = _rup(D, 128)
    q_scale = 1.0 / math.sqrt(D)   # fold attention scale into the q projection

    def merged_t(p, extra=1.0):
        w, b, A, Bm = p
        w_eff = (w.astype(jnp.float32)
                 + scaling * (Bm.astype(jnp.float32) @ A.astype(jnp.float32))) * extra
        return w_eff.T, b.astype(jnp.float32) * extra      # (in,out), (out,)

    wq_t, bq = merged_t(params['q'], q_scale)
    wk_t, bk = merged_t(params['k'])
    wv_t, bv = merged_t(params['v'])
    wo_t, bo = merged_t(params['o'])

    # TODO(synk): on v7x the weight operand could be cast to fp8(e4m3) here.
    def to_heads(w_t, b):
        wh = w_t.reshape(E, H, D).transpose(1, 0, 2)        # (H, E, D)
        wh = jnp.pad(wh, ((0, 0), (0, 0), (0, D_p - D)))
        bh = jnp.pad(b.reshape(H, 1, D), ((0, 0), (0, 0), (0, D_p - D)))
        return wh.astype(jnp.bfloat16), bh.astype(jnp.float32)

    wqh, bqh = to_heads(wq_t, bq)
    wkh, bkh = to_heads(wk_t, bk)
    wvh, bvh = to_heads(wv_t, bv)
    w_qkv = jnp.concatenate([wqh, wkh, wvh], axis=0)        # (3H, E, D_p)
    b_qkv = jnp.concatenate([bqh, bkh, bvh], axis=0)        # (3H, 1, D_p)

    # output projection consumes (h, d_padded)-ordered features
    wo_pad = jnp.pad(wo_t.reshape(H, D, E),
                     ((0, 0), (0, D_p - D), (0, 0))).reshape(H * D_p, E)
    o_proj = prep_plain_linear(wo_pad, bo)

    prepped = dict(E=E, H=H, D=D, D_p=D_p,
                   w_qkv=w_qkv, b_qkv=b_qkv, o_proj=o_proj)
    jax.block_until_ready((w_qkv, b_qkv, o_proj['w'], o_proj['b']))
    return prepped


# ---------------------------------------------------------------------------
# Forward (activation-only work per call)
# ---------------------------------------------------------------------------

def plain_mha_lora_forward(query, key, value, prepped):
    """query/key/value: (len, batch, E) f32. Returns (tgt_len, batch, E) f32."""
    E, H, D_p = prepped['E'], prepped['H'], prepped['D_p']
    T, B, _ = query.shape
    S = key.shape[0]

    t_tile = min(256, _rup(T, 8))
    T_p = _rup(T, t_tile)

    def to_batch_first(x, L_p):
        xb = jnp.transpose(x, (1, 0, 2)).astype(jnp.bfloat16)   # (B, L, E)
        if L_p != x.shape[0]:
            xb = jnp.pad(xb, ((0, 0), (0, L_p - x.shape[0]), (0, 0)))
        return xb

    # object-identity check (same behavior as the torch module's `is` checks)
    self_attn = (query is key) and (key is value)

    if self_attn:
        kv_tile = 512 if T_p % 512 == 0 else t_tile
        x_b = to_batch_first(query, T_p)
        qkv = headed_projection(x_b, prepped['w_qkv'], prepped['b_qkv'],
                                row_tile=t_tile)                # (B, 3H, T_p, D_p)
        q_arr = k_arr = v_arr = qkv
        offs = (0, H, 2 * H)
        src_len, S_p = T, T_p
    else:
        s_tile = min(512, _rup(S, 8))
        S_p = _rup(S, s_tile)
        kv_tile = s_tile
        q_arr = headed_projection(to_batch_first(query, T_p),
                                  prepped['w_qkv'][:H], prepped['b_qkv'][:H],
                                  row_tile=t_tile)
        k_arr = headed_projection(to_batch_first(key, S_p),
                                  prepped['w_qkv'][H:2 * H],
                                  prepped['b_qkv'][H:2 * H],
                                  row_tile=s_tile)
        v_arr = headed_projection(to_batch_first(value, S_p),
                                  prepped['w_qkv'][2 * H:],
                                  prepped['b_qkv'][2 * H:],
                                  row_tile=s_tile)
        offs = (0, 0, 0)
        src_len = S

    attn = flash_sdpa(q_arr, k_arr, v_arr, num_heads=H,
                      q_off=offs[0], k_off=offs[1], v_off=offs[2],
                      src_len=src_len, tq=t_tile, tk_kv=kv_tile)   # (B, H, T_p, D_p)

    # single remaining layout shuffle: (B,H,T,Dp) -> (T*B, H*Dp)
    attn = attn[:, :, :T, :]
    attn2d = jnp.transpose(attn, (2, 0, 1, 3)).reshape(T * B, H * D_p)

    out = plain_linear(attn2d, prepped['o_proj'], out_dtype=jnp.float32)
    return out.reshape(T, B, E)


# ---------------------------------------------------------------------------
# Pure-JAX f32 reference (torch-equivalent math) for correctness check
# ---------------------------------------------------------------------------

def reference_forward(query, key, value, params, num_heads, scaling):
    tgt_len, bsz, E = query.shape
    src_len = key.shape[0]
    hd = E // num_heads

    def lin(x, p):
        w, b, A, Bm = p
        w_eff = w + scaling * (Bm @ A)
        return x @ w_eff.T + b

    q = lin(query.reshape(-1, E), params['q'])
    k = lin(key.reshape(-1, E), params['k'])
    v = lin(value.reshape(-1, E), params['v'])

    def sh(t, L):
        return t.reshape(L, bsz * num_heads, hd).transpose(1, 0, 2)

    qh, kh, vh = sh(q, tgt_len), sh(k, src_len), sh(v, src_len)
    s = jnp.einsum('bqd,bkd->bqk', qh, kh) / math.sqrt(hd)
    p = jax.nn.softmax(s, axis=-1)
    a = jnp.einsum('bqk,bkd->bqd', p, vh)
    a = a.transpose(1, 0, 2).reshape(tgt_len * bsz, E)
    return lin(a, params['o']).reshape(tgt_len, bsz, E)


def _check(out, ref, name):
    out = np.asarray(out, np.float32)
    ref = np.asarray(ref, np.float32)
    assert np.isfinite(out).all(), f"{name}: non-finite output"
    rel = np.linalg.norm(out - ref) / (np.linalg.norm(ref) + 1e-12)
    # bf16 MXU operands => looser agreement than a full-f32 path
    assert rel < 2e-2, f"{name}: rel_l2_error={rel:.4e}"


# ---------------------------------------------------------------------------
# Main
# ---------------------------------------------------------------------------

if __name__ == "__main__":
    root = jax.random.PRNGKey(0)

    def make_params(key, embed_dim, r):
        ks = iter(jax.random.split(key, 16))

        def one(in_dim, out_dim):
            bound = 1.0 / math.sqrt(in_dim)
            w = jax.random.uniform(next(ks), (out_dim, in_dim), jnp.float32, -bound, bound)
            b = jax.random.uniform(next(ks), (out_dim,), jnp.float32, -bound, bound)
            A = jax.random.uniform(next(ks), (r, in_dim), jnp.float32, -bound, bound)
            B = jax.random.uniform(next(ks), (out_dim, r), jnp.float32, -0.1, 0.1)
            return (w, b, A, B)

        return {'q': one(embed_dim, embed_dim), 'k': one(embed_dim, embed_dim),
                'v': one(embed_dim, embed_dim), 'o': one(embed_dim, embed_dim)}

    # ---- Test 1: small self-attention (fused QKV path, head_dim=8 padded) ----
    T, B, E, H, r, alpha = 8, 2, 32, 4, 4, 1
    scaling = alpha / math.sqrt(r)
    kp, kx = jax.random.split(root)
    params = make_params(kp, E, r)
    x = jax.random.normal(kx, (T, B, E), jnp.float32)

    prepped = prepare_params(params, H, scaling)
    out = jax.block_until_ready(plain_mha_lora_forward(x, x, x, prepped))
    assert out.shape == (T, B, E)
    _check(out, reference_forward(x, x, x, params, H, scaling), "self-attn")

    # ---- Test 2: cross-attention — separate headed projections, padded and
    #              masked kv tiles, head_dim=128 (lane-dense) ----
    T2, S2, B2, E2, H2, r2, alpha2 = 19, 37, 2, 640, 5, 8, 2
    scaling2 = alpha2 / math.sqrt(r2)
    kp2, kq2, kk2, kv2 = jax.random.split(jax.random.PRNGKey(1), 4)
    params2 = make_params(kp2, E2, r2)
    q_in = jax.random.normal(kq2, (T2, B2, E2), jnp.float32)
    k_in = jax.random.normal(kk2, (S2, B2, E2), jnp.float32)
    v_in = jax.random.normal(kv2, (S2, B2, E2), jnp.float32)

    prepped2 = prepare_params(params2, H2, scaling2)
    out2 = jax.block_until_ready(
        plain_mha_lora_forward(q_in, k_in, v_in, prepped2))
    assert out2.shape == (T2, B2, E2)
    _check(out2, reference_forward(q_in, k_in, v_in, params2, H2, scaling2),
           "cross-attn")

    print("KERNEL_OK")
</pallas_src>

<mosaic_0001>
module attributes {stable_mosaic.version = 11 : i64} {
  func.func @_headed_proj_kernel(%arg0: i32, %arg1: i32, %arg2: i32, %arg3: memref<1x8x32xbf16, #tpu.memory_space<vmem>>, %arg4: memref<1x32x128xbf16, #tpu.memory_space<vmem>>, %arg5: memref<1x1x128xf32, #tpu.memory_space<vmem>>, %arg6: memref<1x1x8x128xbf16, #tpu.memory_space<vmem>>) attributes {dimension_semantics = [#tpu.dimension_semantics<parallel>, #tpu.dimension_semantics<parallel>, #tpu.dimension_semantics<parallel>], iteration_bounds = array<i64: 12, 1, 2>, scalar_prefetch = 0 : i64, scratch_operands = 0 : i64, tpu.core_type = #tpu.core_type<tc>, window_params = [{transform_indices = @transform_0, window_bounds = array<i64: 1, 8, 32>}, {transform_indices = @transform_1, window_bounds = array<i64: 1, 32, 128>}, {transform_indices = @transform_2, window_bounds = array<i64: 1, 1, 128>}, {transform_indices = @transform_3, window_bounds = array<i64: 1, 1, 8, 128>}]} {
    %c0 = arith.constant 0 : index
    %c0_0 = arith.constant 0 : index
    %c0_1 = arith.constant 0 : index
    %0 = vector.load %arg3[%c0, %c0_0, %c0_1] : memref<1x8x32xbf16, #tpu.memory_space<vmem>>, vector<1x8x32xbf16>
    %1 = vector.shape_cast %0 : vector<1x8x32xbf16> to vector<8x32xbf16>
    %c0_2 = arith.constant 0 : index
    %c0_3 = arith.constant 0 : index
    %c0_4 = arith.constant 0 : index
    %2 = vector.load %arg4[%c0_2, %c0_3, %c0_4] : memref<1x32x128xbf16, #tpu.memory_space<vmem>>, vector<1x32x128xbf16>
    %3 = vector.shape_cast %2 : vector<1x32x128xbf16> to vector<32x128xbf16>
    %cst = arith.constant dense<0.000000e+00> : vector<8x128xf32>
    %4 = tpu.matmul %1, %3, %cst {dimension_numbers = #tpu.dot_dimension_numbers<[1], [0], [0], [1], [0, 0, 1, 1], [], []>} : vector<8x32xbf16>, vector<32x128xbf16>, vector<8x128xf32> -> vector<8x128xf32>
    %c0_5 = arith.constant 0 : index
    %c0_6 = arith.constant 0 : index
    %c0_7 = arith.constant 0 : index
    %5 = vector.load %arg5[%c0_5, %c0_6, %c0_7] : memref<1x1x128xf32, #tpu.memory_space<vmem>>, vector<1x1x128xf32>
    %6 = vector.shape_cast %5 : vector<1x1x128xf32> to vector<1x128xf32>
    %7 = vector.broadcast %6 : vector<1x128xf32> to vector<8x128xf32>
    %8 = arith.addf %4, %7 : vector<8x128xf32>
    %9 = arith.truncf %8 : vector<8x128xf32> to vector<8x128xbf16>
    %c0_8 = arith.constant 0 : index
    %c0_9 = arith.constant 0 : index
    %c0_10 = arith.constant 0 : index
    %c0_11 = arith.constant 0 : index
    %10 = vector.load %arg6[%c0_8, %c0_9, %c0_10, %c0_11] : memref<1x1x8x128xbf16, #tpu.memory_space<vmem>>, vector<1x1x8x128xbf16>
    %11 = vector.shape_cast %10 : vector<1x1x8x128xbf16> to vector<8x128xbf16>
    %12 = vector.shape_cast %9 : vector<8x128xbf16> to vector<1x1x8x128xbf16>
    tpu.vector_store %arg6[%c0_8, %c0_9, %c0_10, %c0_11], %12 {strides = array<i32>} : memref<1x1x8x128xbf16, #tpu.memory_space<vmem>>, vector<1x1x8x128xbf16>,
    return
  }
  func.func @transform_0(%arg0: i32, %arg1: i32, %arg2: i32) -> (i32, i32, i32) {
    %c0_i32 = arith.constant 0 : i32
    %c0_i32_0 = arith.constant 0 : i32
    return %arg2, %arg1, %c0_i32 : i32, i32, i32
  }
  func.func @transform_1(%arg0: i32, %arg1: i32, %arg2: i32) -> (i32, i32, i32) {
    %c0_i32 = arith.constant 0 : i32
    %c0_i32_0 = arith.constant 0 : i32
    %c0_i32_1 = arith.constant 0 : i32
    return %arg0, %c0_i32, %c0_i32_0 : i32, i32, i32
  }
  func.func @transform_2(%arg0: i32, %arg1: i32, %arg2: i32) -> (i32, i32, i32) {
    %c0_i32 = arith.constant 0 : i32
    %c0_i32_0 = arith.constant 0 : i32
    %c0_i32_1 = arith.constant 0 : i32
    return %arg0, %c0_i32, %c0_i32_0 : i32, i32, i32
  }
  func.func @transform_3(%arg0: i32, %arg1: i32, %arg2: i32) -> (i32, i32, i32, i32) {
    %c0_i32 = arith.constant 0 : i32
    %c0_i32_0 = arith.constant 0 : i32
    return %arg2, %arg0, %arg1, %c0_i32 : i32, i32, i32, i32
  }
}

</mosaic_0001>

<llo_original>
// kernel: tpu_custom_call.1
$region0: #{tpu_custom_call.1}
  #allocation0 [shape = 'u32[]', space=smem, size = 0x4, offset = 0x4, fixed_abs, tag = 'smem constant byte address 0x4 - core index']
  #allocation1 [shape = 'u32[144,128]{1,0:T(1,128)}', space=vmem, size = 0x12000, scoped, tag = 'internal scratch']
  %s0 = inlined_call_operand.hbm [shape: bf16[2,8,32], index: 0, kind: input, shape index: {}]
  %s1 = inlined_call_operand.hbm [shape: bf16[12,32,128], index: 1, kind: input, shape index: {}]
  %s2 = inlined_call_operand.hbm [shape: f32[12,1,128], index: 2, kind: input, shape index: {}]
  %s3 = inlined_call_operand.hbm [shape: bf16[2,12,8,128], index: 3, kind: output, shape index: {}]
  %s4 = sld [smem:[#allocation0]]
  $region57: #{tpu_custom_call.1} parent=0
    _
  %s6 = ssub.s32 1, %s4
  %s7 = scalar_select 0, %s6, %s4
  $region1: #{tpu_custom_call.1} parent=0
    #allocation2 [shape = 'u8[4096]{0}', space=vmem, size = 0x1000, scoped, tag = 'input window, operand 0']
    #allocation3 [shape = 's32[2]{0}', space=sflag, size = 0x8, scoped, tag = 'scoped memory for tpu_custom_call.1']
    #allocation4 [shape = 's32[2]{0}', space=sflag, size = 0x8, scoped, tag = 'scoped memory for tpu_custom_call.1']
    #allocation5 [shape = 'u8[16384]{0}', space=vmem, size = 0x4000, scoped, tag = 'input window, operand 1']
    #allocation6 [shape = 's32[2]{0}', space=sflag, size = 0x8, scoped, tag = 'scoped memory for tpu_custom_call.1']
    #allocation7 [shape = 'u8[1024]{0}', space=vmem, size = 0x400, scoped, tag = 'input window, operand 2']
    #allocation8 [shape = 'u8[4096]{0}', space=vmem, size = 0x1000, scoped, tag = 'output window, operand 0']
    %8 = vsyncpa [#allocation3], 0
    %s9 = scalar_lea.sflag [#allocation3], 1
    %10 = vsyncpa %s9, 0
    %11 = vsyncpa [#allocation6], 0
    %s12 = scalar_lea.sflag [#allocation6], 1
    %13 = vsyncpa %s12, 0
    %14 = vsyncpa [#allocation4], 0
    %s15 = scalar_lea.sflag [#allocation4], 1
    %16 = vsyncpa %s15, 0
    loop: start=0, step=1, limit=26
    $region2: #{tpu_custom_call.1} parent=1 // loop_pre_header
      _
    $region3: #{tpu_custom_call.1} parent=1 // loop_header
      %s18 = sphi 0, %s22
      %p19 = scmp.ge.s32.totalorder %s18, 26
      %s25 = sphi 0, %s44
      %s26 = sphi 0, %s40
      %s27 = sphi 0, %s36
      %s28 = sphi 0, %s25
      %s29 = sphi 0, %s26
      %s30 = sphi 0, %s27
      %s31 = sphi 0, %s28
      %s32 = sphi 0, %s29
      %s33 = sphi 0, %s30
      %s49 = sphi 0, %s51
      %s52 = sphi 0, %s49
      %s53 = sphi 0, %s52
      %s69 = sphi 0, %s53
      %s75 = sphi 0, %s77
      %s78 = sphi 0, %s75
      %s79 = sphi 0, %s78
      %s95 = sphi 0, %s79
      %s101 = sphi 0, %s103
      %s104 = sphi 0, %s101
      %s105 = sphi 0, %s104
      %s121 = sphi 0, %s105
      %s131 = sphi 0, %s133
      %s134 = sphi 0, %s131
      %s135 = sphi 0, %s134
      %s151 = sphi 0, %s135
    $region4: #{tpu_custom_call.1} parent=1 // loop_header_branch
      %21 = sbr.rel (%p19) target = $region8
    $region5: #{tpu_custom_call.1} parent=1 // loop_body
      %s23 = ssub.s32 %s18, 1
      %s24 = ssub.s32 %s18, 2
      %s34 = sadd.s32 1, %s27
      %p35 = scmp.ge.s32.totalorder %s34, 2
      %s36 = scalar_select %p35, 0, %s34
      %s37 = sadd.s32 1, %s26
      %s38 = scalar_select %p35, %s37, %s26
      %p39 = scmp.ge.s32.totalorder %s38, 1
      %s40 = scalar_select %p39, 0, %s38
      %s41 = sadd.s32 1, %s25
      %s42 = scalar_select %p39, %s41, %s25
      %p43 = scmp.ge.s32.totalorder %s42, 12
      %s44 = scalar_select %p43, 0, %s42
      %s45 = ssub.s32 %s27, %s36
      %s46 = ssub.s32 %s26, %s40
      %s47 = sor.u32 %s45, %s46
      %p48 = scmp.eq.s32.totalorder %s47, 0
      %s50 = sadd.s32 %s49, 1
      %s51 = scalar_select %p48, %s49, %s50
      %p54 = pneg %p48
      %p55 = scmp.eq.s32.totalorder %s18, 23
      %p56 = por %p54, %p55
      %p57 = scmp.ne.s32.totalorder %s49, %s52
      %p58 = scmp.eq.s32.totalorder %s18, 0
      %p59 = por %p57, %p58
      %p60 = scmp.ne.s32.totalorder %s49, %s52
      %p61 = scmp.eq.s32.totalorder %s23, 23
      %p62 = por %p60, %p61
      %p63 = scmp.ne.s32.totalorder %s52, %s53
      %p64 = scmp.eq.s32.totalorder %s23, 0
      %p65 = por %p63, %p64
      %p66 = scmp.ne.s32.totalorder %s52, %s53
      %p67 = scmp.eq.s32.totalorder %s24, 23
      %p68 = por %p66, %p67
      %p70 = scmp.ne.s32.totalorder %s53, %s69
      %p71 = scmp.eq.s32.totalorder %s24, 0
      %p72 = por %p70, %p71
      %s73 = ssub.s32 %s25, %s44
      %p74 = scmp.eq.s32.totalorder %s73, 0
      %s76 = sadd.s32 %s75, 1
      %s77 = scalar_select %p74, %s75, %s76
      %p80 = pneg %p74
      %p81 = scmp.eq.s32.totalorder %s18, 23
      %p82 = por %p80, %p81
      %p83 = scmp.ne.s32.totalorder %s75, %s78
      %p84 = scmp.eq.s32.totalorder %s18, 0
      %p85 = por %p83, %p84
      %p86 = scmp.ne.s32.totalorder %s75, %s78
      %p87 = scmp.eq.s32.totalorder %s23, 23
      %p88 = por %p86, %p87
      %p89 = scmp.ne.s32.totalorder %s78, %s79
      %p90 = scmp.eq.s32.totalorder %s23, 0
      %p91 = por %p89, %p90
      %p92 = scmp.ne.s32.totalorder %s78, %s79
      %p93 = scmp.eq.s32.totalorder %s24, 23
      %p94 = por %p92, %p93
      %p96 = scmp.ne.s32.totalorder %s79, %s95
      %p97 = scmp.eq.s32.totalorder %s24, 0
      %p98 = por %p96, %p97
      %s99 = ssub.s32 %s25, %s44
      %p100 = scmp.eq.s32.totalorder %s99, 0
      %s102 = sadd.s32 %s101, 1
      %s103 = scalar_select %p100, %s101, %s102
      %p106 = pneg %p100
      %p107 = scmp.eq.s32.totalorder %s18, 23
      %p108 = por %p106, %p107
      %p109 = scmp.ne.s32.totalorder %s101, %s104
      %p110 = scmp.eq.s32.totalorder %s18, 0
      %p111 = por %p109, %p110
      %p112 = scmp.ne.s32.totalorder %s101, %s104
      %p113 = scmp.eq.s32.totalorder %s23, 23
      %p114 = por %p112, %p113
      %p115 = scmp.ne.s32.totalorder %s104, %s105
      %p116 = scmp.eq.s32.totalorder %s23, 0
      %p117 = por %p115, %p116
      %p118 = scmp.ne.s32.totalorder %s104, %s105
      %p119 = scmp.eq.s32.totalorder %s24, 23
      %p120 = por %p118, %p119
      %p122 = scmp.ne.s32.totalorder %s105, %s121
      %p123 = scmp.eq.s32.totalorder %s24, 0
      %p124 = por %p122, %p123
      %s125 = ssub.s32 %s27, %s36
      %s126 = ssub.s32 %s25, %s44
      %s127 = sor.u32 %s125, %s126
      %s128 = ssub.s32 %s26, %s40
      %s129 = sor.u32 %s127, %s128
      %p130 = scmp.eq.s32.totalorder %s129, 0
      %s132 = sadd.s32 %s131, 1
      %s133 = scalar_select %p130, %s131, %s132
      %p136 = pneg %p130
      %p137 = scmp.eq.s32.totalorder %s18, 23
      %p138 = por %p136, %p137
      %p139 = scmp.ne.s32.totalorder %s131, %s134
      %p140 = scmp.eq.s32.totalorder %s18, 0
      %p141 = por %p139, %p140
      %p142 = scmp.ne.s32.totalorder %s131, %s134
      %p143 = scmp.eq.s32.totalorder %s23, 23
      %p144 = por %p142, %p143
      %p145 = scmp.ne.s32.totalorder %s134, %s135
      %p146 = scmp.eq.s32.totalorder %s23, 0
      %p147 = por %p145, %p146
      %p148 = scmp.ne.s32.totalorder %s134, %s135
      %p149 = scmp.eq.s32.totalorder %s24, 23
      %p150 = por %p148, %p149
      %p152 = scmp.ne.s32.totalorder %s135, %s151
      %p153 = scmp.eq.s32.totalorder %s24, 0
      %p154 = por %p152, %p153
      %p155 = scmp.le.s32.totalorder 1, %s18
      %p156 = scmp.lt.s32.totalorder %s18, 25
      %p157 = pnand %p155, %p156
      %p158 = pneg %p157
      // Predicated region
      $region9: #{tpu_custom_call.1} parent=5 // pred_check
        _
      $region10: #{tpu_custom_call.1} parent=5 // pred_check_branch
        %160 = sbr.rel (%p157) target = $region12
      $region11: #{tpu_custom_call.1} parent=5 // pred_region
        %s161 = ssub.s32 %s18, 1
      $region12: #{tpu_custom_call.1} parent=5 // pred_fallthru
        _
      %p162 = scmp.lt.s32.totalorder %s18, 24
      // Predicated region
      $region13: #{tpu_custom_call.1} parent=5 // pred_check
        %p163 = pneg %p162
      $region14: #{tpu_custom_call.1} parent=5 // pred_check_branch
        %165 = sbr.rel (%p163) target = $region16
      $region15: #{tpu_custom_call.1} parent=5 // pred_region
        // Predicated region
        $region17: #{tpu_custom_call.1} parent=15 // pred_check
          %p166 = pneg %p59
        $region18: #{tpu_custom_call.1} parent=15 // pred_check_branch
          %168 = sbr.rel (%p166) target = $region20
        $region19: #{tpu_custom_call.1} parent=15 // pred_region
          %s169 = sand.u32 %s49, 1
          %s170 = scalar_lea.sflag [#allocation3], %s169
          %s171 = sand.u32 %s49, 1
          %s172 = smul.addr %s171, 4
          %s173 = scalar_lea.vmem [#allocation2], %s172
          %s175 = ssub.s32 64, 64
          %176 = vsyncadd %s170, %s175
          %s177 = sadd.s32 %s26, %s27
          %s178 = smul.addr %s177, 64
          %s179 = scalar_lea.hbm %s0, %s178
          %s181 = sshll.u32 %s173, 4
          %s182 = int_to_ptr.vmem [resolvable:$true] %s181
          %184 = dma.hbm_to_vmem [thread:$0]  %s179, 64, %s182, %s170
        $region20: #{tpu_custom_call.1} parent=15 // pred_fallthru
          _
        // Predicated region
        $region21: #{tpu_custom_call.1} parent=15 // pred_check
          %p185 = pneg %p85
        $region22: #{tpu_custom_call.1} parent=15 // pred_check_branch
          %187 = sbr.rel (%p185) target = $region24
        $region23: #{tpu_custom_call.1} parent=15 // pred_region
          %s188 = sand.u32 %s18, 1
          %s189 = scalar_lea.sflag [#allocation6], %s188
          %s190 = sand.u32 %s75, 1
          %s191 = smul.addr %s190, 16
          %s192 = scalar_lea.vmem [#allocation5], %s191
          %s194 = ssub.s32 256, 256
          %195 = vsyncadd %s189, %s194
          %s196 = smul.addr %s25, 4
          %s197 = smul.addr %s196, 64
          %s198 = scalar_lea.hbm %s1, %s197
          %s199 = sshll.u32 %s192, 4
          %s200 = int_to_ptr.vmem [resolvable:$true] %s199
          %205 = dma.hbm_to_vmem [thread:$0]  %s198, 256, %s200, %s189, 64, 64, 4
        $region24: #{tpu_custom_call.1} parent=15 // pred_fallthru
          _
        // Predicated region
        $region25: #{tpu_custom_call.1} parent=15 // pred_check
          %p206 = pneg %p111
        $region26: #{tpu_custom_call.1} parent=15 // pred_check_branch
          %208 = sbr.rel (%p206) target = $region28
        $region27: #{tpu_custom_call.1} parent=15 // pred_region
          %s209 = sand.u32 %s18, 1
          %s210 = scalar_lea.sflag [#allocation6], %s209
          %s211 = sand.u32 %s101, 1
          %s212 = scalar_lea.vmem [#allocation7], %s211
          %s214 = ssub.s32 16, 16
          %215 = vsyncadd %s210, %s214
          %s216 = smul.addr %s25, 16
          %s217 = scalar_lea.hbm %s2, %s216
          %s219 = sshll.u32 %s212, 4
          %s220 = int_to_ptr.vmem [resolvable:$true] %s219
          %222 = dma.hbm_to_vmem [thread:$0]  %s217, 16, %s220, %s210
        $region28: #{tpu_custom_call.1} parent=15 // pred_fallthru
          _
      $region16: #{tpu_custom_call.1} parent=5 // pred_fallthru
        _
      %p223 = scmp.le.s32.totalorder 1, %s18
      %p224 = scmp.lt.s32.totalorder %s18, 25
      %p225 = pnand %p223, %p224
      %p226 = pneg %p225
      // Predicated region
      $region29: #{tpu_custom_call.1} parent=5 // pred_check
        _
      $region30: #{tpu_custom_call.1} parent=5 // pred_check_branch
        %228 = sbr.rel (%p225) target = $region32
      $region31: #{tpu_custom_call.1} parent=5 // pred_region
        %s229 = ssub.s32 %s18, 1
        %s230 = sand.u32 %s52, 1
        %s231 = scalar_lea.sflag [#allocation3], %s230
        %s232 = sand.u32 %s52, 1
        %s233 = smul.addr %s232, 4
        %s234 = scalar_lea.vmem [#allocation2], %s233
        // Predicated region
        $region33: #{tpu_custom_call.1} parent=31 // pred_check
          %p235 = pneg %p65
        $region34: #{tpu_custom_call.1} parent=31 // pred_check_branch
          %237 = sbr.rel (%p235) target = $region36
        $region35: #{tpu_custom_call.1} parent=31 // pred_region
          %238 = dma.done %s231, 64
        $region36: #{tpu_custom_call.1} parent=31 // pred_fallthru
          _
        %s239 = sand.u32 %s23, 1
        %s240 = scalar_lea.sflag [#allocation6], %s239
        %s241 = sand.u32 %s78, 1
        %s242 = smul.addr %s241, 16
        %s243 = scalar_lea.vmem [#allocation5], %s242
        // Predicated region
        $region37: #{tpu_custom_call.1} parent=31 // pred_check
          %p244 = pneg %p91
        $region38: #{tpu_custom_call.1} parent=31 // pred_check_branch
          %246 = sbr.rel (%p244) target = $region40
        $region39: #{tpu_custom_call.1} parent=31 // pred_region
          %247 = dma.done %s240, 256
        $region40: #{tpu_custom_call.1} parent=31 // pred_fallthru
          _
        %s248 = sand.u32 %s23, 1
        %s249 = scalar_lea.sflag [#allocation6], %s248
        %s250 = sand.u32 %s104, 1
        %s251 = scalar_lea.vmem [#allocation7], %s250
        // Predicated region
        $region41: #{tpu_custom_call.1} parent=31 // pred_check
          %p252 = pneg %p117
        $region42: #{tpu_custom_call.1} parent=31 // pred_check_branch
          %254 = sbr.rel (%p252) target = $region44
        $region43: #{tpu_custom_call.1} parent=31 // pred_region
          %255 = dma.done %s249, 16
        $region44: #{tpu_custom_call.1} parent=31 // pred_fallthru
          _
        %s256 = sand.u32 %s52, 1
        %s257 = scalar_lea.sflag [#allocation3], %s256
        %s258 = sand.u32 %s52, 1
        %s259 = smul.addr %s258, 4
        %s260 = scalar_lea.vmem [#allocation2], %s259
        %p261 = pneg %p65
        %p262 = pneg %p62
        %s263 = sand.u32 %s23, 1
        %s264 = scalar_lea.sflag [#allocation6], %s263
        %s265 = sand.u32 %s78, 1
        %s266 = smul.addr %s265, 16
        %s267 = scalar_lea.vmem [#allocation5], %s266
        %p268 = pneg %p91
        %p269 = pneg %p88
        %s270 = sand.u32 %s23, 1
        %s271 = scalar_lea.sflag [#allocation6], %s270
        %s272 = sand.u32 %s104, 1
        %s273 = scalar_lea.vmem [#allocation7], %s272
        %p274 = pneg %p117
        %p275 = pneg %p114
        %p276 = pneg %p147
        %p277 = pneg %p144
        %s278 = sand.u32 %s134, 1
        %s279 = scalar_lea.sflag [#allocation4], %s278
        %s280 = sand.u32 %s134, 1
        %s281 = smul.addr %s280, 4
        %s282 = scalar_lea.vmem [#allocation8], %s281
        %v284 = vld [vmem:[%s234] sm:$0xf]
        %v285 = vld [vmem:[%s243] sm:$0xf]
        %v286 = vld [vmem:[%s243 + $0x4] sm:$0xf]
        %v287 = vld [vmem:[%s243 + $0x8] sm:$0xf]
        %v288 = vld [vmem:[%s243 + $0xc] sm:$0xf]
        %v289 = vld [vmem:[%s251] sm:$0x1]
        %v291 = vlaneseq
        %v292 = vshrl.u32 %v291, 7
        %v293 = vsub.s32 0, %v292
        %v294 = vrot.slane %v289, %v293
        %v300 = vunpack.c.l.b16 %v285
        %v301 = vunpack.c.l.b16 %v286
        %v302 = vunpack.c.l.b16 %v287
        %v303 = vunpack.c.l.b16 %v288
        %v304 = vpack.c.b16 %v301, %v300
        %v305 = vpack.c.b16 %v303, %v302
        %vm308 = vcmask 261120
        %v310 = vsel %vm308, %v284, 0
        %312 = vmatprep.subr.bf16.mxu0 0
        %313 = vmatpush1.bf16.msra.mxu0 %v304
        %314 = vmatprep.subr.bf16.mxu0 0
        %315 = vmatpush1.bf16.msra.mxu0 %v305
        %316 = vmatprep.subr.bf16.mxu0 0
        %317 = vmatpush1.bf16.msra.mxu0 0
        %318 = vmatprep.subr.bf16.mxu0 0
        %319 = vmatpush1.bf16.msra.mxu0 0
        %320 = vmatprep.subr.bf16.mxu0 0
        %321 = vmatpush1.bf16.msra.mxu0 0
        %322 = vmatprep.subr.bf16.mxu0 0
        %323 = vmatpush1.bf16.msra.mxu0 0
        %324 = vmatprep.subr.bf16.mxu0 0
        %325 = vmatpush1.bf16.msra.mxu0 0
        %326 = vmatprep.subr.bf16.mxu0 0
        %327 = vmatpush1.bf16.msra.mxu0 0
        %328 = vmatprep.subr.bf16.mxu0 0
        %329 = vmatpush1.bf16.msra.mxu0 0
        %330 = vmatprep.subr.bf16.mxu0 0
        %331 = vmatpush1.bf16.msra.mxu0 0
        %332 = vmatprep.subr.bf16.mxu0 0
        %333 = vmatpush1.bf16.msra.mxu0 0
        %334 = vmatprep.subr.bf16.mxu0 0
        %335 = vmatpush1.bf16.msra.mxu0 0
        %336 = vmatprep.subr.bf16.mxu0 0
        %337 = vmatpush1.bf16.msra.mxu0 0
        %338 = vmatprep.subr.bf16.mxu0 0
        %339 = vmatpush1.bf16.msra.mxu0 0
        %340 = vmatprep.subr.bf16.mxu0 0
        %341 = vmatpush1.bf16.msra.mxu0 0
        %342 = vmatprep.subr.bf16.mxu0 0
        %343 = vmatpush1.bf16.msra.mxu0 0
        %344 = vmatprep.mubr.bf16.mxu0 0
        %345 = vmatmul.mubr.bf16.gmra.mrb[0].mxu0 %v310
        %v346 = vpop.f32.mrb[0].mxu0
        %v347 = vadd.f32 %v294, %v346
        %v348 = vpop.f32.mrb[0].mxu0
        %v349 = vpop.f32.mrb[0].mxu0
        %v350 = vpop.f32.mrb[0].mxu0
        %351 = vdwg.mxu0
        %v352 = vpack.c.bf16 %v347, %v347
        %353 = vst [vmem:[%s282] sm:$0xf] %v352
        %s354 = sand.u32 %s134, 1
        %s355 = scalar_lea.sflag [#allocation4], %s354
        %s356 = sand.u32 %s134, 1
        %s357 = smul.addr %s356, 4
        %s358 = scalar_lea.vmem [#allocation8], %s357
        // Predicated region
        $region45: #{tpu_custom_call.1} parent=31 // pred_check
          %p359 = pneg %p144
        $region46: #{tpu_custom_call.1} parent=31 // pred_check_branch
          %361 = sbr.rel (%p359) target = $region48
        $region47: #{tpu_custom_call.1} parent=31 // pred_region
          %s363 = ssub.s32 64, 64
          %364 = vsyncadd %s355, %s363
          %s365 = sadd.s32 %s29, %s28
          %s366 = smul.addr %s30, 12
          %s367 = sadd.s32 %s365, %s366
          %s368 = smul.addr %s367, 64
          %s369 = scalar_lea.hbm %s3, %s368
          %s371 = sshll.u32 %s358, 4
          %s372 = int_to_ptr.vmem [resolvable:$true] %s371
          %374 = dma.vmem_to_hbm [thread:$0]  %s372, 64, %s369, %s355
        $region48: #{tpu_custom_call.1} parent=31 // pred_fallthru
          _
      $region32: #{tpu_custom_call.1} parent=5 // pred_fallthru
        _
      %p375 = scmp.le.s32.totalorder 2, %s18
      // Predicated region
      $region49: #{tpu_custom_call.1} parent=5 // pred_check
        %p376 = pneg %p375
      $region50: #{tpu_custom_call.1} parent=5 // pred_check_branch
        %378 = sbr.rel (%p376) target = $region52
      $region51: #{tpu_custom_call.1} parent=5 // pred_region
        %s379 = ssub.s32 %s18, 2
        // Predicated region
        $region53: #{tpu_custom_call.1} parent=51 // pred_check
          %p380 = pneg %p150
        $region54: #{tpu_custom_call.1} parent=51 // pred_check_branch
          %382 = sbr.rel (%p380) target = $region56
        $region55: #{tpu_custom_call.1} parent=51 // pred_region
          %s383 = sand.u32 %s135, 1
          %s384 = scalar_lea.sflag [#allocation4], %s383
          %s385 = sand.u32 %s135, 1
          %s386 = smul.addr %s385, 4
          %s387 = scalar_lea.vmem [#allocation8], %s386
          %388 = dma.done %s384, 64
        $region56: #{tpu_custom_call.1} parent=51 // pred_fallthru
          _
      $region52: #{tpu_custom_call.1} parent=5 // pred_fallthru
        _
    $region6: #{tpu_custom_call.1} parent=1 // loop_footer
      %s22 = sadd.s32 1, %s18
    $region7: #{tpu_custom_call.1} parent=1 // loop_footer_branch
      %17 = sbr.rel target = $region3
    $region8: #{tpu_custom_call.1} parent=1 // loop_exit
      _
    %389 = vsyncpa [#allocation3], 1
    %s390 = scalar_lea.sflag [#allocation3], 1
    %391 = vsyncpa %s390, 1
    %392 = vsyncpa [#allocation6], 1
    %s393 = scalar_lea.sflag [#allocation6], 1
    %394 = vsyncpa %s393, 1
    %395 = vsyncpa [#allocation4], 1
    %s396 = scalar_lea.sflag [#allocation4], 1
    %397 = vsyncpa %s396, 1

</llo_original>
